<compile_context>
chip_gen: v7x
topology: tpu7x:2x2x1
jax: 0.10.0
libtpu: 0.0.40
codegen_flags: <defaults>
</compile_context>

<pallas_src>
import jax
import jax.numpy as jnp
from jax.experimental import pallas as pl
from jax.experimental.pallas import tpu as pltpu


def _resblock_kernel(x_ref, bn_ref, w1t_ref, w2t_ref, o_ref):
    # x_ref: (C, L) tile — channels on sublanes, spatial voxels on lanes (lane-dense).
    x = x_ref[...].astype(jnp.float32)

    # Packed BN params: columns [s1, b1, s2, b2]; (C, 1) slices broadcast along lanes.
    s1 = bn_ref[:, 0:1]
    b1 = bn_ref[:, 1:2]
    s2 = bn_ref[:, 2:3]
    b2 = bn_ref[:, 3:4]

    # BN1 (folded to scale/shift) + ReLU
    h = jnp.maximum(x * s1 + b1, 0.0)
    # conv1: 1x1x1 conv == channel contraction, W1^T @ h -> (Cout, L)
    h = jnp.dot(w1t_ref[...], h, preferred_element_type=jnp.float32)
    # BN2 + ReLU
    h = jnp.maximum(h * s2 + b2, 0.0)
    # conv2
    h = jnp.dot(w2t_ref[...], h, preferred_element_type=jnp.float32)

    # TODO(synk): Dropout3d is identity in eval mode; training-mode channel dropout not implemented.
    # Residual add (in_channels == out_channels, stride == 1 -> downsample is None)
    o_ref[...] = (h + x).astype(o_ref.dtype)


def resblock3d_111(x_ncdhw, params, *, target_lanes=8192):
    """x_ncdhw: (N, C, D, H, W) float32.  params: packed BN + transposed conv weights."""
    N, C, D, H, W = x_ncdhw.shape
    w1t = params["w1t"]            # (Cout, Cin)  == PyTorch conv1.weight squeezed
    w2t = params["w2t"]            # (Cout, Cout)
    Cout, Cin = w1t.shape
    assert C == Cin
    # TODO(synk): downsample branch (stride != 1 or in_channels != out_channels) not implemented.
    assert Cout == Cin, "demo assumes in_channels == out_channels (no downsample branch)"

    S = D * H * W
    assert S % 128 == 0, "demo assumes voxel count per batch divisible by 128 lanes"

    # Largest lane-tile <= target_lanes that is a multiple of 128 and divides S.
    L = min(target_lanes, S)
    L -= L % 128
    while S % L != 0:
        L -= 128

    # NCDHW -> (N, C, S): contiguous collapse, no data movement, no transpose.
    x3 = x_ncdhw.reshape(N, C, S)

    grid = (N, S // L)
    x_spec = pl.BlockSpec((None, C, L), lambda n, s: (n, 0, s))   # kernel sees (C, L)

    out3 = pl.pallas_call(
        _resblock_kernel,
        out_shape=jax.ShapeDtypeStruct((N, C, S), x_ncdhw.dtype),
        grid_spec=pltpu.PrefetchScalarGridSpec(
            num_scalar_prefetch=0,
            grid=grid,
            in_specs=[
                x_spec,                                          # x tile
                pl.BlockSpec((C, 4), lambda n, s: (0, 0)),       # packed BN [s1,b1,s2,b2]
                pl.BlockSpec((Cout, Cin), lambda n, s: (0, 0)),  # W1^T
                pl.BlockSpec((Cout, Cout), lambda n, s: (0, 0)),  # W2^T
            ],
            out_specs=x_spec,
        ),
        compiler_params=pltpu.CompilerParams(
            dimension_semantics=("parallel", "parallel")),
    )(x3, params["bn"], w1t, w2t)

    # (N, C, S) -> NCDHW: free reshape.
    return out3.reshape(N, C, D, H, W)


def make_params(key, in_channels, out_channels, eps=1e-5):
    """Deterministic synthetic parameters, BN folded into scale/shift (eval mode)."""
    assert in_channels == out_channels
    C = in_channels
    ks = jax.random.split(key, 10)

    def fold_bn(gamma, beta, mean, var):
        scale = gamma / jnp.sqrt(var + eps)
        shift = beta - mean * scale
        return scale, shift

    # BN1 over in_channels
    g1 = 1.0 + 0.1 * jax.random.normal(ks[0], (C,), jnp.float32)
    be1 = 0.1 * jax.random.normal(ks[1], (C,), jnp.float32)
    m1 = 0.1 * jax.random.normal(ks[2], (C,), jnp.float32)
    v1 = jnp.abs(jax.random.normal(ks[3], (C,), jnp.float32)) + 0.5
    s1, b1 = fold_bn(g1, be1, m1, v1)

    # conv1 weight: PyTorch (Cout, Cin, 1,1,1) -> (Cout, Cin), used as W^T @ x in the kernel
    w1t = jax.random.normal(ks[4], (out_channels, in_channels), jnp.float32) * (in_channels ** -0.5)

    # BN2 over out_channels
    g2 = 1.0 + 0.1 * jax.random.normal(ks[5], (C,), jnp.float32)
    be2 = 0.1 * jax.random.normal(ks[6], (C,), jnp.float32)
    m2 = 0.1 * jax.random.normal(ks[7], (C,), jnp.float32)
    v2 = jnp.abs(jax.random.normal(ks[8], (C,), jnp.float32)) + 0.5
    s2, b2 = fold_bn(g2, be2, m2, v2)

    w2t = jax.random.normal(ks[9], (out_channels, out_channels), jnp.float32) * (out_channels ** -0.5)

    # Pack the four per-channel BN vectors into one (C, 4) array: [s1, b1, s2, b2].
    bn = jnp.stack([s1, b1, s2, b2], axis=1)

    return {"bn": bn, "w1t": w1t, "w2t": w2t}


if __name__ == "__main__":
    key = jax.random.PRNGKey(0)
    k_x, k_p = jax.random.split(key)

    N, C, D, H, W = 2, 8, 8, 8, 8          # in_channels == out_channels == 8, S = 512
    x = jax.random.normal(k_x, (N, C, D, H, W), jnp.float32)
    params = make_params(k_p, C, C)

    out = resblock3d_111(x, params)
    jax.block_until_ready(out)

    # Pure-JAX reference of the same math, same (N, C, S) layout.
    xf = x.reshape(N, C, -1)
    s1 = params["bn"][:, 0].reshape(1, C, 1)
    b1 = params["bn"][:, 1].reshape(1, C, 1)
    s2 = params["bn"][:, 2].reshape(1, C, 1)
    b2 = params["bn"][:, 3].reshape(1, C, 1)
    h = jnp.maximum(xf * s1 + b1, 0.0)
    h = jnp.einsum("oc,ncs->nos", params["w1t"], h)
    h = jnp.maximum(h * s2 + b2, 0.0)
    h = jnp.einsum("oc,ncs->nos", params["w2t"], h)
    ref = (h + xf).reshape(N, C, D, H, W)

    assert jnp.allclose(out, ref, atol=1e-4, rtol=1e-4), float(jnp.max(jnp.abs(out - ref)))
    print("KERNEL_OK")
</pallas_src>

<mosaic_0001>
module attributes {stable_mosaic.version = 11 : i64} {
  func.func @_resblock_kernel(%arg0: i32, %arg1: i32, %arg2: memref<1x8x512xf32, #tpu.memory_space<vmem>>, %arg3: memref<8x4xf32, #tpu.memory_space<vmem>>, %arg4: memref<8x8xf32, #tpu.memory_space<vmem>>, %arg5: memref<8x8xf32, #tpu.memory_space<vmem>>, %arg6: memref<1x8x512xf32, #tpu.memory_space<vmem>>) attributes {dimension_semantics = [#tpu.dimension_semantics<parallel>, #tpu.dimension_semantics<parallel>], iteration_bounds = array<i64: 2, 1>, scalar_prefetch = 0 : i64, scratch_operands = 0 : i64, tpu.core_type = #tpu.core_type<tc>, window_params = [{transform_indices = @transform_0, window_bounds = array<i64: 1, 8, 512>}, {pipeline_mode = #tpu.pipeline_mode<synchronous>, transform_indices = @transform_1, window_bounds = array<i64: 8, 4>}, {pipeline_mode = #tpu.pipeline_mode<synchronous>, transform_indices = @transform_2, window_bounds = array<i64: 8, 8>}, {pipeline_mode = #tpu.pipeline_mode<synchronous>, transform_indices = @transform_3, window_bounds = array<i64: 8, 8>}, {transform_indices = @transform_4, window_bounds = array<i64: 1, 8, 512>}]} {
    %c0 = arith.constant 0 : index
    %c0_0 = arith.constant 0 : index
    %c0_1 = arith.constant 0 : index
    %0 = vector.load %arg2[%c0, %c0_0, %c0_1] : memref<1x8x512xf32, #tpu.memory_space<vmem>>, vector<1x8x512xf32>
    %1 = vector.shape_cast %0 : vector<1x8x512xf32> to vector<8x512xf32>
    %c0_2 = arith.constant 0 : index
    %c0_3 = arith.constant 0 : index
    %2 = vector.load %arg3[%c0_2, %c0_3] : memref<8x4xf32, #tpu.memory_space<vmem>>, vector<8x1xf32>
    %c0_4 = arith.constant 0 : index
    %c1 = arith.constant 1 : index
    %3 = vector.load %arg3[%c0_4, %c1] : memref<8x4xf32, #tpu.memory_space<vmem>>, vector<8x1xf32>
    %c0_5 = arith.constant 0 : index
    %c2 = arith.constant 2 : index
    %4 = vector.load %arg3[%c0_5, %c2] : memref<8x4xf32, #tpu.memory_space<vmem>>, vector<8x1xf32>
    %c0_6 = arith.constant 0 : index
    %c3 = arith.constant 3 : index
    %5 = vector.load %arg3[%c0_6, %c3] : memref<8x4xf32, #tpu.memory_space<vmem>>, vector<8x1xf32>
    %6 = vector.broadcast %2 : vector<8x1xf32> to vector<8x512xf32>
    %7 = arith.mulf %1, %6 : vector<8x512xf32>
    %8 = vector.broadcast %3 : vector<8x1xf32> to vector<8x512xf32>
    %9 = arith.addf %7, %8 : vector<8x512xf32>
    %cst = arith.constant 0.000000e+00 : f32
    %10 = vector.broadcast %cst : f32 to vector<8x512xf32>
    %11 = arith.maximumf %9, %10 : vector<8x512xf32>
    %c0_7 = arith.constant 0 : index
    %c0_8 = arith.constant 0 : index
    %12 = vector.load %arg4[%c0_7, %c0_8] : memref<8x8xf32, #tpu.memory_space<vmem>>, vector<8x8xf32>
    %cst_9 = arith.constant dense<0.000000e+00> : vector<8x512xf32>
    %13 = tpu.matmul %12, %11, %cst_9 {dimension_numbers = #tpu.dot_dimension_numbers<[1], [0], [0], [1], [0, 0, 1, 1], [], []>} : vector<8x8xf32>, vector<8x512xf32>, vector<8x512xf32> -> vector<8x512xf32>
    %14 = vector.broadcast %4 : vector<8x1xf32> to vector<8x512xf32>
    %15 = arith.mulf %13, %14 : vector<8x512xf32>
    %16 = vector.broadcast %5 : vector<8x1xf32> to vector<8x512xf32>
    %17 = arith.addf %15, %16 : vector<8x512xf32>
    %cst_10 = arith.constant 0.000000e+00 : f32
    %18 = vector.broadcast %cst_10 : f32 to vector<8x512xf32>
    %19 = arith.maximumf %17, %18 : vector<8x512xf32>
    %c0_11 = arith.constant 0 : index
    %c0_12 = arith.constant 0 : index
    %20 = vector.load %arg5[%c0_11, %c0_12] : memref<8x8xf32, #tpu.memory_space<vmem>>, vector<8x8xf32>
    %cst_13 = arith.constant dense<0.000000e+00> : vector<8x512xf32>
    %21 = tpu.matmul %20, %19, %cst_13 {dimension_numbers = #tpu.dot_dimension_numbers<[1], [0], [0], [1], [0, 0, 1, 1], [], []>} : vector<8x8xf32>, vector<8x512xf32>, vector<8x512xf32> -> vector<8x512xf32>
    %22 = arith.addf %21, %1 : vector<8x512xf32>
    %c0_14 = arith.constant 0 : index
    %c0_15 = arith.constant 0 : index
    %c0_16 = arith.constant 0 : index
    %23 = vector.load %arg6[%c0_14, %c0_15, %c0_16] : memref<1x8x512xf32, #tpu.memory_space<vmem>>, vector<1x8x512xf32>
    %24 = vector.shape_cast %23 : vector<1x8x512xf32> to vector<8x512xf32>
    %25 = vector.shape_cast %22 : vector<8x512xf32> to vector<1x8x512xf32>
    tpu.vector_store %arg6[%c0_14, %c0_15, %c0_16], %25 {strides = array<i32>} : memref<1x8x512xf32, #tpu.memory_space<vmem>>, vector<1x8x512xf32>,
    return
  }
  func.func @transform_0(%arg0: i32, %arg1: i32) -> (i32, i32, i32) {
    %c0_i32 = arith.constant 0 : i32
    %c0_i32_0 = arith.constant 0 : i32
    return %arg0, %c0_i32, %arg1 : i32, i32, i32
  }
  func.func @transform_1(%arg0: i32, %arg1: i32) -> (i32, i32) {
    %c0_i32 = arith.constant 0 : i32
    %c0_i32_0 = arith.constant 0 : i32
    %c0_i32_1 = arith.constant 0 : i32
    return %c0_i32, %c0_i32_0 : i32, i32
  }
  func.func @transform_2(%arg0: i32, %arg1: i32) -> (i32, i32) {
    %c0_i32 = arith.constant 0 : i32
    %c0_i32_0 = arith.constant 0 : i32
    %c0_i32_1 = arith.constant 0 : i32
    return %c0_i32, %c0_i32_0 : i32, i32
  }
  func.func @transform_3(%arg0: i32, %arg1: i32) -> (i32, i32) {
    %c0_i32 = arith.constant 0 : i32
    %c0_i32_0 = arith.constant 0 : i32
    %c0_i32_1 = arith.constant 0 : i32
    return %c0_i32, %c0_i32_0 : i32, i32
  }
  func.func @transform_4(%arg0: i32, %arg1: i32) -> (i32, i32, i32) {
    %c0_i32 = arith.constant 0 : i32
    %c0_i32_0 = arith.constant 0 : i32
    return %arg0, %c0_i32, %arg1 : i32, i32, i32
  }
}

</mosaic_0001>

<llo_original>
// kernel: tpu_custom_call.1
$region0: #{tpu_custom_call.1}
  #allocation0 [shape = 'u32[]', space=smem, size = 0x4, offset = 0x4, fixed_abs, tag = 'smem constant byte address 0x4 - core index']
  #allocation1 [shape = 'u32[144,128]{1,0:T(1,128)}', space=vmem, size = 0x12000, scoped, tag = 'internal scratch']
  %s0 = inlined_call_operand.hbm [shape: f32[2,8,512], index: 0, kind: input, shape index: {}]
  %s1 = inlined_call_operand.vmem [shape: f32[8,4], index: 1, kind: input, shape index: {}]
  %s2 = inlined_call_operand.vmem [shape: f32[8,8], index: 2, kind: input, shape index: {}]
  %s3 = inlined_call_operand.vmem [shape: f32[8,8], index: 3, kind: input, shape index: {}]
  %s4 = inlined_call_operand.hbm [shape: f32[2,8,512], index: 4, kind: output, shape index: {}]
  %s5 = sld [smem:[#allocation0]]
  $region53: #{tpu_custom_call.1} parent=0
    _
  %s7 = ssub.s32 1, %s5
  %s8 = scalar_select 0, %s7, %s5
  $region1: #{tpu_custom_call.1} parent=0
    #allocation2 [shape = 'u8[32768]{0}', space=vmem, size = 0x8000, scoped, tag = 'input window, operand 0']
    #allocation3 [shape = 's32[2]{0}', space=sflag, size = 0x8, scoped, tag = 'scoped memory for tpu_custom_call.1']
    #allocation4 [shape = 's32[2]{0}', space=sflag, size = 0x8, scoped, tag = 'scoped memory for tpu_custom_call.1']
    #allocation5 [shape = 'u8[32768]{0}', space=vmem, size = 0x8000, scoped, tag = 'output window, operand 0']
    %9 = vsyncpa [#allocation3], 0
    %s10 = scalar_lea.sflag [#allocation3], 1
    %11 = vsyncpa %s10, 0
    %12 = vsyncpa [#allocation4], 0
    %s13 = scalar_lea.sflag [#allocation4], 1
    %14 = vsyncpa %s13, 0
    loop: start=0, step=1, limit=4
    $region2: #{tpu_custom_call.1} parent=1 // loop_pre_header
      _
    $region3: #{tpu_custom_call.1} parent=1 // loop_header
      %s16 = sphi 0, %s20
      %p17 = scmp.ge.s32.totalorder %s16, 4
      %s23 = sphi 0, %s35
      %s24 = sphi 0, %s31
      %s25 = sphi 0, %s23
      %s26 = sphi 0, %s24
      %s27 = sphi 0, %s25
      %s28 = sphi 0, %s26
      %s40 = sphi 0, %s42
      %s43 = sphi 0, %s40
      %s44 = sphi 0, %s43
      %s60 = sphi 0, %s44
      %s64 = sphi 0, %s64
      %s66 = sphi 0, %s64
      %s67 = sphi 0, %s66
      %s81 = sphi 0, %s67
      %s85 = sphi 0, %s85
      %s87 = sphi 0, %s85
      %s88 = sphi 0, %s87
      %s102 = sphi 0, %s88
      %s106 = sphi 0, %s106
      %s108 = sphi 0, %s106
      %s109 = sphi 0, %s108
      %s123 = sphi 0, %s109
      %s131 = sphi 0, %s133
      %s134 = sphi 0, %s131
      %s135 = sphi 0, %s134
      %s151 = sphi 0, %s135
    $region4: #{tpu_custom_call.1} parent=1 // loop_header_branch
      %19 = sbr.rel (%p17) target = $region8
    $region5: #{tpu_custom_call.1} parent=1 // loop_body
      %s21 = ssub.s32 %s16, 1
      %s22 = ssub.s32 %s16, 2
      %s29 = sadd.s32 1, %s24
      %p30 = scmp.ge.s32.totalorder %s29, 1
      %s31 = scalar_select %p30, 0, %s29
      %s32 = sadd.s32 1, %s23
      %s33 = scalar_select %p30, %s32, %s23
      %p34 = scmp.ge.s32.totalorder %s33, 2
      %s35 = scalar_select %p34, 0, %s33
      %s36 = ssub.s32 %s23, %s35
      %s37 = ssub.s32 %s24, %s31
      %s38 = sor.u32 %s36, %s37
      %p39 = scmp.eq.s32.totalorder %s38, 0
      %s41 = sadd.s32 %s40, 1
      %s42 = scalar_select %p39, %s40, %s41
      %p45 = pneg %p39
      %p46 = scmp.eq.s32.totalorder %s16, 1
      %p47 = por %p45, %p46
      %p48 = scmp.ne.s32.totalorder %s40, %s43
      %p49 = scmp.eq.s32.totalorder %s16, 0
      %p50 = por %p48, %p49
      %p51 = scmp.ne.s32.totalorder %s40, %s43
      %p52 = scmp.eq.s32.totalorder %s21, 1
      %p53 = por %p51, %p52
      %p54 = scmp.ne.s32.totalorder %s43, %s44
      %p55 = scmp.eq.s32.totalorder %s21, 0
      %p56 = por %p54, %p55
      %p57 = scmp.ne.s32.totalorder %s43, %s44
      %p58 = scmp.eq.s32.totalorder %s22, 1
      %p59 = por %p57, %p58
      %p61 = scmp.ne.s32.totalorder %s44, %s60
      %p62 = scmp.eq.s32.totalorder %s22, 0
      %p63 = por %p61, %p62
      %s65 = sadd.s32 %s64, 1
      %p68 = scmp.eq.s32.totalorder %s16, 1
      %p69 = scmp.ne.s32.totalorder %s64, %s66
      %p70 = scmp.eq.s32.totalorder %s16, 0
      %p71 = por %p69, %p70
      %p72 = scmp.ne.s32.totalorder %s64, %s66
      %p73 = scmp.eq.s32.totalorder %s21, 1
      %p74 = por %p72, %p73
      %p75 = scmp.ne.s32.totalorder %s66, %s67
      %p76 = scmp.eq.s32.totalorder %s21, 0
      %p77 = por %p75, %p76
      %p78 = scmp.ne.s32.totalorder %s66, %s67
      %p79 = scmp.eq.s32.totalorder %s22, 1
      %p80 = por %p78, %p79
      %p82 = scmp.ne.s32.totalorder %s67, %s81
      %p83 = scmp.eq.s32.totalorder %s22, 0
      %p84 = por %p82, %p83
      %s86 = sadd.s32 %s85, 1
      %p89 = scmp.eq.s32.totalorder %s16, 1
      %p90 = scmp.ne.s32.totalorder %s85, %s87
      %p91 = scmp.eq.s32.totalorder %s16, 0
      %p92 = por %p90, %p91
      %p93 = scmp.ne.s32.totalorder %s85, %s87
      %p94 = scmp.eq.s32.totalorder %s21, 1
      %p95 = por %p93, %p94
      %p96 = scmp.ne.s32.totalorder %s87, %s88
      %p97 = scmp.eq.s32.totalorder %s21, 0
      %p98 = por %p96, %p97
      %p99 = scmp.ne.s32.totalorder %s87, %s88
      %p100 = scmp.eq.s32.totalorder %s22, 1
      %p101 = por %p99, %p100
      %p103 = scmp.ne.s32.totalorder %s88, %s102
      %p104 = scmp.eq.s32.totalorder %s22, 0
      %p105 = por %p103, %p104
      %s107 = sadd.s32 %s106, 1
      %p110 = scmp.eq.s32.totalorder %s16, 1
      %p111 = scmp.ne.s32.totalorder %s106, %s108
      %p112 = scmp.eq.s32.totalorder %s16, 0
      %p113 = por %p111, %p112
      %p114 = scmp.ne.s32.totalorder %s106, %s108
      %p115 = scmp.eq.s32.totalorder %s21, 1
      %p116 = por %p114, %p115
      %p117 = scmp.ne.s32.totalorder %s108, %s109
      %p118 = scmp.eq.s32.totalorder %s21, 0
      %p119 = por %p117, %p118
      %p120 = scmp.ne.s32.totalorder %s108, %s109
      %p121 = scmp.eq.s32.totalorder %s22, 1
      %p122 = por %p120, %p121
      %p124 = scmp.ne.s32.totalorder %s109, %s123
      %p125 = scmp.eq.s32.totalorder %s22, 0
      %p126 = por %p124, %p125
      %s127 = ssub.s32 %s23, %s35
      %s128 = ssub.s32 %s24, %s31
      %s129 = sor.u32 %s127, %s128
      %p130 = scmp.eq.s32.totalorder %s129, 0
      %s132 = sadd.s32 %s131, 1
      %s133 = scalar_select %p130, %s131, %s132
      %p136 = pneg %p130
      %p137 = scmp.eq.s32.totalorder %s16, 1
      %p138 = por %p136, %p137
      %p139 = scmp.ne.s32.totalorder %s131, %s134
      %p140 = scmp.eq.s32.totalorder %s16, 0
      %p141 = por %p139, %p140
      %p142 = scmp.ne.s32.totalorder %s131, %s134
      %p143 = scmp.eq.s32.totalorder %s21, 1
      %p144 = por %p142, %p143
      %p145 = scmp.ne.s32.totalorder %s134, %s135
      %p146 = scmp.eq.s32.totalorder %s21, 0
      %p147 = por %p145, %p146
      %p148 = scmp.ne.s32.totalorder %s134, %s135
      %p149 = scmp.eq.s32.totalorder %s22, 1
      %p150 = por %p148, %p149
      %p152 = scmp.ne.s32.totalorder %s135, %s151
      %p153 = scmp.eq.s32.totalorder %s22, 0
      %p154 = por %p152, %p153
      %p155 = scmp.le.s32.totalorder 1, %s16
      %p156 = scmp.lt.s32.totalorder %s16, 3
      %p157 = pnand %p155, %p156
      %p158 = pneg %p157
      // Predicated region
      $region9: #{tpu_custom_call.1} parent=5 // pred_check
        _
      $region10: #{tpu_custom_call.1} parent=5 // pred_check_branch
        %160 = sbr.rel (%p157) target = $region12
      $region11: #{tpu_custom_call.1} parent=5 // pred_region
        %s161 = ssub.s32 %s16, 1
        // Predicated region
        $region13: #{tpu_custom_call.1} parent=11 // pred_check
          %p162 = pneg %p77
        $region14: #{tpu_custom_call.1} parent=11 // pred_check_branch
          %164 = sbr.rel (%p162) target = $region16
        $region15: #{tpu_custom_call.1} parent=11 // pred_region
          _
        $region16: #{tpu_custom_call.1} parent=11 // pred_fallthru
          _
        // Predicated region
        $region17: #{tpu_custom_call.1} parent=11 // pred_check
          %p165 = pneg %p98
        $region18: #{tpu_custom_call.1} parent=11 // pred_check_branch
          %167 = sbr.rel (%p165) target = $region20
        $region19: #{tpu_custom_call.1} parent=11 // pred_region
          _
        $region20: #{tpu_custom_call.1} parent=11 // pred_fallthru
          _
        // Predicated region
        $region21: #{tpu_custom_call.1} parent=11 // pred_check
          %p168 = pneg %p119
        $region22: #{tpu_custom_call.1} parent=11 // pred_check_branch
          %170 = sbr.rel (%p168) target = $region24
        $region23: #{tpu_custom_call.1} parent=11 // pred_region
          _
        $region24: #{tpu_custom_call.1} parent=11 // pred_fallthru
          _
      $region12: #{tpu_custom_call.1} parent=5 // pred_fallthru
        _
      %p171 = scmp.lt.s32.totalorder %s16, 2
      // Predicated region
      $region25: #{tpu_custom_call.1} parent=5 // pred_check
        %p172 = pneg %p171
      $region26: #{tpu_custom_call.1} parent=5 // pred_check_branch
        %174 = sbr.rel (%p172) target = $region28
      $region27: #{tpu_custom_call.1} parent=5 // pred_region
        // Predicated region
        $region29: #{tpu_custom_call.1} parent=27 // pred_check
          %p175 = pneg %p50
        $region30: #{tpu_custom_call.1} parent=27 // pred_check_branch
          %177 = sbr.rel (%p175) target = $region32
        $region31: #{tpu_custom_call.1} parent=27 // pred_region
          %s178 = sand.u32 %s40, 1
          %s179 = scalar_lea.sflag [#allocation3], %s178
          %s180 = sand.u32 %s40, 1
          %s181 = smul.addr %s180, 32
          %s182 = scalar_lea.vmem [#allocation2], %s181
          %s183 = smul.u32 4, %s24
          %s185 = ssub.s32 512, 512
          %186 = vsyncadd %s179, %s185
          %s187 = smul.addr %s23, 4
          %s188 = sadd.s32 %s183, %s187
          %s189 = smul.addr %s188, 128
          %s190 = scalar_lea.hbm %s0, %s189
          %s192 = sshll.u32 %s182, 4
          %s193 = int_to_ptr.vmem [resolvable:$true] %s192
          %195 = dma.hbm_to_vmem [thread:$0]  %s190, 512, %s193, %s179
        $region32: #{tpu_custom_call.1} parent=27 // pred_fallthru
          _
      $region28: #{tpu_custom_call.1} parent=5 // pred_fallthru
        _
      %p196 = scmp.le.s32.totalorder 1, %s16
      %p197 = scmp.lt.s32.totalorder %s16, 3
      %p198 = pnand %p196, %p197
      %p199 = pneg %p198
      // Predicated region
      $region33: #{tpu_custom_call.1} parent=5 // pred_check
        _
      $region34: #{tpu_custom_call.1} parent=5 // pred_check_branch
        %201 = sbr.rel (%p198) target = $region36
      $region35: #{tpu_custom_call.1} parent=5 // pred_region
        %s202 = ssub.s32 %s16, 1
        %s203 = sand.u32 %s43, 1
        %s204 = scalar_lea.sflag [#allocation3], %s203
        %s205 = sand.u32 %s43, 1
        %s206 = smul.addr %s205, 32
        %s207 = scalar_lea.vmem [#allocation2], %s206
        // Predicated region
        $region37: #{tpu_custom_call.1} parent=35 // pred_check
          %p208 = pneg %p56
        $region38: #{tpu_custom_call.1} parent=35 // pred_check_branch
          %210 = sbr.rel (%p208) target = $region40
        $region39: #{tpu_custom_call.1} parent=35 // pred_region
          %211 = dma.done %s204, 512
        $region40: #{tpu_custom_call.1} parent=35 // pred_fallthru
          _
        %s212 = sand.u32 %s43, 1
        %s213 = scalar_lea.sflag [#allocation3], %s212
        %s214 = sand.u32 %s43, 1
        %s215 = smul.addr %s214, 32
        %s216 = scalar_lea.vmem [#allocation2], %s215
        %p217 = pneg %p56
        %p218 = pneg %p53
        %p219 = pneg %p77
        %p220 = pneg %p74
        %p221 = pneg %p98
        %p222 = pneg %p95
        %p223 = pneg %p119
        %p224 = pneg %p116
        %p225 = pneg %p147
        %p226 = pneg %p144
        %s227 = sand.u32 %s134, 1
        %s228 = scalar_lea.sflag [#allocation4], %s227
        %s229 = sand.u32 %s134, 1
        %s230 = smul.addr %s229, 32
        %s231 = scalar_lea.vmem [#allocation5], %s230
        %s232 = smul.u32 4, %s26
        %s233 = smul.u32 4, %s26
        %v234 = vld [vmem:[%s207] sm:$0xff]
        %v235 = vld [vmem:[%s207 + $0x8] sm:$0xff]
        %v236 = vld [vmem:[%s207 + $0x10] sm:$0xff]
        %v237 = vld [vmem:[%s207 + $0x18] sm:$0xff]
        %v238 = vld [vmem:[%s1] sm:$0xff]
        %240 = vset.pattern.permute.xlu0 0
        %241 = vperm.xlu0 %240, %v238
        %v242 = vpop.permute.xlu0 %241
        %v244 = vmul.f32 %v234, %v242
        %v245 = vmul.f32 %v235, %v242
        %v246 = vmul.f32 %v236, %v242
        %v247 = vmul.f32 %v237, %v242
        %248 = vset.pattern.permute.xlu0 1
        %249 = vperm.xlu0 %248, %v238
        %v250 = vpop.permute.xlu0 %249
        %v252 = vadd.f32 %v244, %v250
        %v253 = vadd.f32 %v245, %v250
        %v254 = vadd.f32 %v246, %v250
        %v255 = vadd.f32 %v247, %v250
        %v256 = vmax.f32 %v252, 0.0
        %v257 = vmax.f32 %v253, 0.0
        %v258 = vmax.f32 %v254, 0.0
        %v259 = vmax.f32 %v255, 0.0
        %v260 = vld [vmem:[%s2] sm:$0xff]
        %vm261 = vcmask 64512
        %v263 = vsel %vm261, %v260, 0
        %265 = vmatprep.subr.mxu0 %v257
        %266 = vmatpush1.msra.mxu0 %v256
        %267 = vmatprep.subr.mxu0 0.0
        %268 = vmatpush1.msra.mxu0 0.0
        %269 = vmatprep.subr.mxu0 0.0
        %270 = vmatpush1.msra.mxu0 0.0
        %271 = vmatprep.subr.mxu0 0.0
        %272 = vmatpush1.msra.mxu0 0.0
        %273 = vmatprep.subr.mxu0 0.0
        %274 = vmatpush1.msra.mxu0 0.0
        %275 = vmatprep.subr.mxu0 0.0
        %276 = vmatpush1.msra.mxu0 0.0
        %277 = vmatprep.subr.mxu0 0.0
        %278 = vmatpush1.msra.mxu0 0.0
        %279 = vmatprep.subr.mxu0 0.0
        %280 = vmatpush1.msra.mxu0 0.0
        %281 = vmatprep.subr.mxu0 0.0
        %282 = vmatpush1.msra.mxu0 0.0
        %283 = vmatprep.subr.mxu0 0.0
        %284 = vmatpush1.msra.mxu0 0.0
        %285 = vmatprep.subr.mxu0 0.0
        %286 = vmatpush1.msra.mxu0 0.0
        %287 = vmatprep.subr.mxu0 0.0
        %288 = vmatpush1.msra.mxu0 0.0
        %289 = vmatprep.subr.mxu0 0.0
        %290 = vmatpush1.msra.mxu0 0.0
        %291 = vmatprep.subr.mxu0 0.0
        %292 = vmatpush1.msra.mxu0 0.0
        %293 = vmatprep.subr.mxu0 0.0
        %294 = vmatpush1.msra.mxu0 0.0
        %295 = vmatprep.subr.mxu0 0.0
        %296 = vmatpush1.msra.mxu0 0.0
        %297 = vmatprep.subr.mxu0 0.0
        %298 = vmatpush1.msra.mxu0 0.0
        %299 = vmatprep.subr.mxu0 0.0
        %300 = vmatpush1.msra.mxu0 0.0
        %301 = vmatprep.subr.mxu0 0.0
        %302 = vmatpush1.msra.mxu0 0.0
        %303 = vmatprep.subr.mxu0 0.0
        %304 = vmatpush1.msra.mxu0 0.0
        %305 = vmatprep.subr.mxu0 0.0
        %306 = vmatpush1.msra.mxu0 0.0
        %307 = vmatprep.subr.mxu0 0.0
        %308 = vmatpush1.msra.mxu0 0.0
        %309 = vmatprep.subr.mxu0 0.0
        %310 = vmatpush1.msra.mxu0 0.0
        %311 = vmatprep.subr.mxu0 0.0
        %312 = vmatpush1.msra.mxu0 0.0
        %313 = vmatprep.subr.mxu0 0.0
        %314 = vmatpush1.msra.mxu0 0.0
        %315 = vmatprep.subr.mxu0 0.0
        %316 = vmatpush1.msra.mxu0 0.0
        %317 = vmatprep.subr.mxu0 0.0
        %318 = vmatpush1.msra.mxu0 0.0
        %319 = vmatprep.subr.mxu0 0.0
        %320 = vmatpush1.msra.mxu0 0.0
        %321 = vmatprep.subr.mxu0 0.0
        %322 = vmatpush1.msra.mxu0 0.0
        %323 = vmatprep.subr.mxu0 0.0
        %324 = vmatpush1.msra.mxu0 0.0
        %325 = vmatprep.subr.mxu0 0.0
        %326 = vmatpush1.msra.mxu0 0.0
        %327 = vmatprep.subr.mxu0 0.0
        %328 = vmatpush1.msra.mxu0 0.0
        %329 = vmatprep.mubr.f32.mxu0 0.0
        %330 = vmatmul.mubr.f32.gmra.mrb[0].mxu0 %v263
        %v331 = vpop.f32.mrb[0].mxu0
        %v332 = vadd.f32 0.0, %v331
        %v333 = vpop.f32.mrb[0].mxu0
        %v334 = vadd.f32 0.0, %v333
        %335 = vdwg.mxu0
        %336 = vmatprep.subr.mxu0 %v259
        %337 = vmatpush1.msra.mxu0 %v258
        %338 = vmatprep.subr.mxu0 0.0
        %339 = vmatpush1.msra.mxu0 0.0
        %340 = vmatprep.subr.mxu0 0.0
        %341 = vmatpush1.msra.mxu0 0.0
        %342 = vmatprep.subr.mxu0 0.0
        %343 = vmatpush1.msra.mxu0 0.0
        %344 = vmatprep.subr.mxu0 0.0
        %345 = vmatpush1.msra.mxu0 0.0
        %346 = vmatprep.subr.mxu0 0.0
        %347 = vmatpush1.msra.mxu0 0.0
        %348 = vmatprep.subr.mxu0 0.0
        %349 = vmatpush1.msra.mxu0 0.0
        %350 = vmatprep.subr.mxu0 0.0
        %351 = vmatpush1.msra.mxu0 0.0
        %352 = vmatprep.subr.mxu0 0.0
        %353 = vmatpush1.msra.mxu0 0.0
        %354 = vmatprep.subr.mxu0 0.0
        %355 = vmatpush1.msra.mxu0 0.0
        %356 = vmatprep.subr.mxu0 0.0
        %357 = vmatpush1.msra.mxu0 0.0
        %358 = vmatprep.subr.mxu0 0.0
        %359 = vmatpush1.msra.mxu0 0.0
        %360 = vmatprep.subr.mxu0 0.0
        %361 = vmatpush1.msra.mxu0 0.0
        %362 = vmatprep.subr.mxu0 0.0
        %363 = vmatpush1.msra.mxu0 0.0
        %364 = vmatprep.subr.mxu0 0.0
        %365 = vmatpush1.msra.mxu0 0.0
        %366 = vmatprep.subr.mxu0 0.0
        %367 = vmatpush1.msra.mxu0 0.0
        %368 = vmatprep.subr.mxu0 0.0
        %369 = vmatpush1.msra.mxu0 0.0
        %370 = vmatprep.subr.mxu0 0.0
        %371 = vmatpush1.msra.mxu0 0.0
        %372 = vmatprep.subr.mxu0 0.0
        %373 = vmatpush1.msra.mxu0 0.0
        %374 = vmatprep.subr.mxu0 0.0
        %375 = vmatpush1.msra.mxu0 0.0
        %376 = vmatprep.subr.mxu0 0.0
        %377 = vmatpush1.msra.mxu0 0.0
        %378 = vmatprep.subr.mxu0 0.0
        %379 = vmatpush1.msra.mxu0 0.0
        %380 = vmatprep.subr.mxu0 0.0
        %381 = vmatpush1.msra.mxu0 0.0
        %382 = vmatprep.subr.mxu0 0.0
        %383 = vmatpush1.msra.mxu0 0.0
        %384 = vmatprep.subr.mxu0 0.0
        %385 = vmatpush1.msra.mxu0 0.0
        %386 = vmatprep.subr.mxu0 0.0
        %387 = vmatpush1.msra.mxu0 0.0
        %388 = vmatprep.subr.mxu0 0.0
        %389 = vmatpush1.msra.mxu0 0.0
        %390 = vmatprep.subr.mxu0 0.0
        %391 = vmatpush1.msra.mxu0 0.0
        %392 = vmatprep.subr.mxu0 0.0
        %393 = vmatpush1.msra.mxu0 0.0
        %394 = vmatprep.subr.mxu0 0.0
        %395 = vmatpush1.msra.mxu0 0.0
        %396 = vmatprep.subr.mxu0 0.0
        %397 = vmatpush1.msra.mxu0 0.0
        %398 = vmatprep.subr.mxu0 0.0
        %399 = vmatpush1.msra.mxu0 0.0
        %400 = vmatprep.mubr.f32.mxu0 0.0
        %401 = vmatmul.mubr.f32.gmra.mrb[0].mxu0 %v263
        %v402 = vpop.f32.mrb[0].mxu0
        %v403 = vadd.f32 0.0, %v402
        %v404 = vpop.f32.mrb[0].mxu0
        %v405 = vadd.f32 0.0, %v404
        %406 = vdwg.mxu0
        %407 = vset.pattern.permute.xlu0 2
        %408 = vperm.xlu0 %407, %v238
        %v409 = vpop.permute.xlu0 %408
        %v411 = vmul.f32 %v332, %v409
        %v412 = vmul.f32 %v334, %v409
        %v413 = vmul.f32 %v403, %v409
        %v414 = vmul.f32 %v405, %v409
        %415 = vset.pattern.permute.xlu0 3
        %416 = vperm.xlu0 %415, %v238
        %v417 = vpop.permute.xlu0 %416
        %v419 = vadd.f32 %v411, %v417
        %v420 = vadd.f32 %v412, %v417
        %v421 = vadd.f32 %v413, %v417
        %v422 = vadd.f32 %v414, %v417
        %v423 = vmax.f32 %v419, 0.0
        %v424 = vmax.f32 %v420, 0.0
        %v425 = vmax.f32 %v421, 0.0
        %v426 = vmax.f32 %v422, 0.0
        %v427 = vld [vmem:[%s3] sm:$0xff]
        %v429 = vsel %vm261, %v427, 0
        %431 = vmatprep.subr.mxu0 %v424
        %432 = vmatpush1.msra.mxu0 %v423
        %433 = vmatprep.subr.mxu0 0.0
        %434 = vmatpush1.msra.mxu0 0.0
        %435 = vmatprep.subr.mxu0 0.0
        %436 = vmatpush1.msra.mxu0 0.0
        %437 = vmatprep.subr.mxu0 0.0
        %438 = vmatpush1.msra.mxu0 0.0
        %439 = vmatprep.subr.mxu0 0.0
        %440 = vmatpush1.msra.mxu0 0.0
        %441 = vmatprep.subr.mxu0 0.0
        %442 = vmatpush1.msra.mxu0 0.0
        %443 = vmatprep.subr.mxu0 0.0
        %444 = vmatpush1.msra.mxu0 0.0
        %445 = vmatprep.subr.mxu0 0.0
        %446 = vmatpush1.msra.mxu0 0.0
        %447 = vmatprep.subr.mxu0 0.0
        %448 = vmatpush1.msra.mxu0 0.0
        %449 = vmatprep.subr.mxu0 0.0
        %450 = vmatpush1.msra.mxu0 0.0
        %451 = vmatprep.subr.mxu0 0.0
        %452 = vmatpush1.msra.mxu0 0.0
        %453 = vmatprep.subr.mxu0 0.0
        %454 = vmatpush1.msra.mxu0 0.0
        %455 = vmatprep.subr.mxu0 0.0
        %456 = vmatpush1.msra.mxu0 0.0
        %457 = vmatprep.subr.mxu0 0.0
        %458 = vmatpush1.msra.mxu0 0.0
        %459 = vmatprep.subr.mxu0 0.0
        %460 = vmatpush1.msra.mxu0 0.0
        %461 = vmatprep.subr.mxu0 0.0
        %462 = vmatpush1.msra.mxu0 0.0
        %463 = vmatprep.subr.mxu0 0.0
        %464 = vmatpush1.msra.mxu0 0.0
        %465 = vmatprep.subr.mxu0 0.0
        %466 = vmatpush1.msra.mxu0 0.0
        %467 = vmatprep.subr.mxu0 0.0
        %468 = vmatpush1.msra.mxu0 0.0
        %469 = vmatprep.subr.mxu0 0.0
        %470 = vmatpush1.msra.mxu0 0.0
        %471 = vmatprep.subr.mxu0 0.0
        %472 = vmatpush1.msra.mxu0 0.0
        %473 = vmatprep.subr.mxu0 0.0
        %474 = vmatpush1.msra.mxu0 0.0
        %475 = vmatprep.subr.mxu0 0.0
        %476 = vmatpush1.msra.mxu0 0.0
        %477 = vmatprep.subr.mxu0 0.0
        %478 = vmatpush1.msra.mxu0 0.0
        %479 = vmatprep.subr.mxu0 0.0
        %480 = vmatpush1.msra.mxu0 0.0
        %481 = vmatprep.subr.mxu0 0.0
        %482 = vmatpush1.msra.mxu0 0.0
        %483 = vmatprep.subr.mxu0 0.0
        %484 = vmatpush1.msra.mxu0 0.0
        %485 = vmatprep.subr.mxu0 0.0
        %486 = vmatpush1.msra.mxu0 0.0
        %487 = vmatprep.subr.mxu0 0.0
        %488 = vmatpush1.msra.mxu0 0.0
        %489 = vmatprep.subr.mxu0 0.0
        %490 = vmatpush1.msra.mxu0 0.0
        %491 = vmatprep.subr.mxu0 0.0
        %492 = vmatpush1.msra.mxu0 0.0
        %493 = vmatprep.subr.mxu0 0.0
        %494 = vmatpush1.msra.mxu0 0.0
        %495 = vmatprep.mubr.f32.mxu0 0.0
        %496 = vmatmul.mubr.f32.gmra.mrb[0].mxu0 %v429
        %v497 = vpop.f32.mrb[0].mxu0
        %v498 = vadd.f32 %v234, %v497
        %v499 = vpop.f32.mrb[0].mxu0
        %v500 = vadd.f32 %v235, %v499
        %501 = vdwg.mxu0
        %502 = vmatprep.subr.mxu0 %v426
        %503 = vmatpush1.msra.mxu0 %v425
        %504 = vmatprep.subr.mxu0 0.0
        %505 = vmatpush1.msra.mxu0 0.0
        %506 = vmatprep.subr.mxu0 0.0
        %507 = vmatpush1.msra.mxu0 0.0
        %508 = vmatprep.subr.mxu0 0.0
        %509 = vmatpush1.msra.mxu0 0.0
        %510 = vmatprep.subr.mxu0 0.0
        %511 = vmatpush1.msra.mxu0 0.0
        %512 = vmatprep.subr.mxu0 0.0
        %513 = vmatpush1.msra.mxu0 0.0
        %514 = vmatprep.subr.mxu0 0.0
        %515 = vmatpush1.msra.mxu0 0.0
        %516 = vmatprep.subr.mxu0 0.0
        %517 = vmatpush1.msra.mxu0 0.0
        %518 = vmatprep.subr.mxu0 0.0
        %519 = vmatpush1.msra.mxu0 0.0
        %520 = vmatprep.subr.mxu0 0.0
        %521 = vmatpush1.msra.mxu0 0.0
        %522 = vmatprep.subr.mxu0 0.0
        %523 = vmatpush1.msra.mxu0 0.0
        %524 = vmatprep.subr.mxu0 0.0
        %525 = vmatpush1.msra.mxu0 0.0
        %526 = vmatprep.subr.mxu0 0.0
        %527 = vmatpush1.msra.mxu0 0.0
        %528 = vmatprep.subr.mxu0 0.0
        %529 = vmatpush1.msra.mxu0 0.0
        %530 = vmatprep.subr.mxu0 0.0
        %531 = vmatpush1.msra.mxu0 0.0
        %532 = vmatprep.subr.mxu0 0.0
        %533 = vmatpush1.msra.mxu0 0.0
        %534 = vmatprep.subr.mxu0 0.0
        %535 = vmatpush1.msra.mxu0 0.0
        %536 = vmatprep.subr.mxu0 0.0
        %537 = vmatpush1.msra.mxu0 0.0
        %538 = vmatprep.subr.mxu0 0.0
        %539 = vmatpush1.msra.mxu0 0.0
        %540 = vmatprep.subr.mxu0 0.0
        %541 = vmatpush1.msra.mxu0 0.0
        %542 = vmatprep.subr.mxu0 0.0
        %543 = vmatpush1.msra.mxu0 0.0
        %544 = vmatprep.subr.mxu0 0.0
        %545 = vmatpush1.msra.mxu0 0.0
        %546 = vmatprep.subr.mxu0 0.0
        %547 = vmatpush1.msra.mxu0 0.0
        %548 = vmatprep.subr.mxu0 0.0
        %549 = vmatpush1.msra.mxu0 0.0
        %550 = vmatprep.subr.mxu0 0.0
        %551 = vmatpush1.msra.mxu0 0.0
        %552 = vmatprep.subr.mxu0 0.0
        %553 = vmatpush1.msra.mxu0 0.0
        %554 = vmatprep.subr.mxu0 0.0
        %555 = vmatpush1.msra.mxu0 0.0
        %556 = vmatprep.subr.mxu0 0.0
        %557 = vmatpush1.msra.mxu0 0.0
        %558 = vmatprep.subr.mxu0 0.0
        %559 = vmatpush1.msra.mxu0 0.0
        %560 = vmatprep.subr.mxu0 0.0
        %561 = vmatpush1.msra.mxu0 0.0
        %562 = vmatprep.subr.mxu0 0.0
        %563 = vmatpush1.msra.mxu0 0.0
        %564 = vmatprep.subr.mxu0 0.0
        %565 = vmatpush1.msra.mxu0 0.0
        %566 = vmatprep.mubr.f32.mxu0 0.0
        %567 = vmatmul.mubr.f32.gmra.mrb[0].mxu0 %v429
        %v568 = vpop.f32.mrb[0].mxu0
        %v569 = vadd.f32 %v236, %v568
        %v570 = vpop.f32.mrb[0].mxu0
        %v571 = vadd.f32 %v237, %v570
        %572 = vdwg.mxu0
        %573 = vst [vmem:[%s231] sm:$0xff] %v498
        %574 = vst [vmem:[%s231 + $0x8] sm:$0xff] %v500
        %575 = vst [vmem:[%s231 + $0x10] sm:$0xff] %v569
        %576 = vst [vmem:[%s231 + $0x18] sm:$0xff] %v571
        %s577 = sand.u32 %s134, 1
        %s578 = scalar_lea.sflag [#allocation4], %s577
        %s579 = sand.u32 %s134, 1
        %s580 = smul.addr %s579, 32
        %s581 = scalar_lea.vmem [#allocation5], %s580
        // Predicated region
        $region41: #{tpu_custom_call.1} parent=35 // pred_check
          %p582 = pneg %p144
        $region42: #{tpu_custom_call.1} parent=35 // pred_check_branch
          %584 = sbr.rel (%p582) target = $region44
        $region43: #{tpu_custom_call.1} parent=35 // pred_region
          %s585 = smul.u32 4, %s26
          %s587 = ssub.s32 512, 512
          %588 = vsyncadd %s578, %s587
          %s589 = smul.addr %s25, 4
          %s590 = sadd.s32 %s585, %s589
          %s591 = smul.addr %s590, 128
          %s592 = scalar_lea.hbm %s4, %s591
          %s594 = sshll.u32 %s581, 4
          %s595 = int_to_ptr.vmem [resolvable:$true] %s594
          %597 = dma.vmem_to_hbm [thread:$0]  %s595, 512, %s592, %s578
        $region44: #{tpu_custom_call.1} parent=35 // pred_fallthru
          _
      $region36: #{tpu_custom_call.1} parent=5 // pred_fallthru
        _
      %p598 = scmp.le.s32.totalorder 2, %s16
      // Predicated region
      $region45: #{tpu_custom_call.1} parent=5 // pred_check
        %p599 = pneg %p598
      $region46: #{tpu_custom_call.1} parent=5 // pred_check_branch
        %601 = sbr.rel (%p599) target = $region48
      $region47: #{tpu_custom_call.1} parent=5 // pred_region
        %s602 = ssub.s32 %s16, 2
        // Predicated region
        $region49: #{tpu_custom_call.1} parent=47 // pred_check
          %p603 = pneg %p150
        $region50: #{tpu_custom_call.1} parent=47 // pred_check_branch
          %605 = sbr.rel (%p603) target = $region52
        $region51: #{tpu_custom_call.1} parent=47 // pred_region
          %s606 = sand.u32 %s135, 1
          %s607 = scalar_lea.sflag [#allocation4], %s606
          %s608 = sand.u32 %s135, 1
          %s609 = smul.addr %s608, 32
          %s610 = scalar_lea.vmem [#allocation5], %s609
          %611 = dma.done %s607, 512
        $region52: #{tpu_custom_call.1} parent=47 // pred_fallthru
          _
      $region48: #{tpu_custom_call.1} parent=5 // pred_fallthru
        _
    $region6: #{tpu_custom_call.1} parent=1 // loop_footer
      %s20 = sadd.s32 1, %s16
    $region7: #{tpu_custom_call.1} parent=1 // loop_footer_branch
      %15 = sbr.rel target = $region3
    $region8: #{tpu_custom_call.1} parent=1 // loop_exit
      _
    %612 = vsyncpa [#allocation3], 1
    %s613 = scalar_lea.sflag [#allocation3], 1
    %614 = vsyncpa %s613, 1
    %615 = vsyncpa [#allocation4], 1
    %s616 = scalar_lea.sflag [#allocation4], 1
    %617 = vsyncpa %s616, 1

</llo_original>
